<compile_context>
chip_gen: v7x
topology: tpu7x:2x2x1
jax: 0.10.0
libtpu: 0.0.40
codegen_flags: <defaults>
</compile_context>

<pallas_src>
import jax
import jax.numpy as jnp
from jax.experimental import pallas as pl
from jax.experimental.pallas import tpu as pltpu


def _round_up(n, m):
    return ((n + m - 1) // m) * m


def _vmem_capacity_bytes(default=64 * 1024 * 1024):
    """Best-effort VMEM capacity query; falls back to a v7x-sized default."""
    try:
        info = pltpu.get_tpu_info()
        cap = getattr(info, "vmem_capacity_bytes", None)
        if cap:
            return int(cap)
    except Exception:
        pass
    return default


def _int_pow(t, n):
    """t**n for a small non-negative integer n using only VPU multiplies."""
    n = int(n)
    if n == 0:
        return jnp.ones_like(t)
    result = None
    base = t
    while n:
        if n & 1:
            result = base if result is None else result * base
        n >>= 1
        if n:
            base = base * base
    return result


def _make_kernel(gamma_neg, gamma_pos, clip, eps, boundary_scale,
                 fast_binary, T_real, T_pad):
    gamma_neg = float(gamma_neg)
    gamma_pos = float(gamma_pos)
    clip = float(clip) if clip is not None else 0.0
    eps = float(eps)
    boundary_scale = float(boundary_scale)   # boundary_weight / (B * (T_real - 1))
    need_lane_mask = (T_pad != T_real)

    def kernel(x_ref, y_ref, out_ref):
        # (tile_b, T_pad) tile; compute in f32 regardless of input dtype.
        x = x_ref[...].astype(jnp.float32)
        y = y_ref[...].astype(jnp.float32)
        lane = jax.lax.broadcasted_iota(jnp.int32, x.shape, 1)

        # Single sigmoid pass (EUP), reused by ASL and the boundary term.
        p = jax.nn.sigmoid(x)

        # ---------------- CustomAsymmetricLoss contribution -----------------
        valid = y > -0.5
        if need_lane_mask:
            valid = jnp.logical_and(valid, lane < T_real)

        if fast_binary:
            # Valid targets are {0, 1}: fuse the two logs into one select+log
            # and replace jnp.power (exp+log on EUP) with VPU multiplies.
            # No pre-masking of y/p needed: the final where() re-masks, and
            # log(max(., eps)) keeps every element finite.
            xs_neg = 1.0 - p
            if clip > 0.0:
                xs_neg = jnp.minimum(xs_neg + clip, 1.0)
            is_pos = y > 0.5
            sel = jnp.where(is_pos, p, xs_neg)
            loss = jnp.log(jnp.maximum(sel, eps))
            if gamma_neg > 0.0 or gamma_pos > 0.0:
                t = 1.0 - sel
                w = jnp.where(is_pos, _int_pow(t, gamma_pos),
                              _int_pow(t, gamma_neg))
                loss = loss * w
        else:
            # General (soft-label) formulation, masked exactly like the
            # reference so jnp.power never sees a negative base.
            ys = jnp.where(valid, y, 0.0)
            xs_pos = jnp.where(valid, p, 0.5)
            xs_neg = 1.0 - xs_pos
            if clip > 0.0:
                xs_neg = jnp.minimum(xs_neg + clip, 1.0)
            los_pos = ys * jnp.log(jnp.maximum(xs_pos, eps))
            los_neg = (1.0 - ys) * jnp.log(jnp.maximum(xs_neg, eps))
            loss = los_pos + los_neg
            if gamma_neg > 0.0 or gamma_pos > 0.0:
                pt = xs_pos * ys + xs_neg * (1.0 - ys)
                g = gamma_pos * ys + gamma_neg * (1.0 - ys)
                loss = loss * jnp.power(1.0 - pt, g)

        contrib = jnp.where(valid, -loss, 0.0)

        # ---------------- boundary (1D edge) L1 contribution ----------------
        # Uses raw (unmasked) probabilities/targets, as in the PyTorch module.
        # pltpu.roll follows jnp.roll semantics, so shift = T_pad - 1 gives
        # p_next[i] = p[(i + 1) % T_pad]; edge i is the (i, i+1) difference.
        p_next = pltpu.roll(p, shift=T_pad - 1, axis=1)
        y_next = pltpu.roll(y, shift=T_pad - 1, axis=1)
        pred_edge = jnp.abs(p_next - p)
        target_edge = jnp.minimum(jnp.abs(y_next - y), 1.0)
        edge = jnp.abs(pred_edge - target_edge)
        # Keep only the T_real - 1 real edges: this kills the circular wrap
        # edge and the (already-zero, last-column-replicated) padded edges.
        edge = jnp.where(lane < (T_real - 1), edge, 0.0)

        contrib = contrib + boundary_scale * edge
        out_ref[...] = jnp.full((1, 1, 1), jnp.sum(contrib), jnp.float32)

    return kernel


def boundary_aware_asymmetric_loss(
    logits,
    targets,
    gamma_neg=4,
    gamma_pos=1,
    clip=0.05,
    eps=1e-8,
    boundary_weight=1.0,
    assume_binary_targets=True,   # set False if soft labels are possible
    tile_b=None,
):
    """logits: (B, 1, T); targets: (B, T) with -1 = ignore. Returns scalar f32.

    Inputs are streamed in their native dtype (supply bf16 logits / narrow
    targets on bandwidth-bound parts; no wrapper-side f32 cast is added).
    NOTE: assume_binary_targets=True requires valid targets to be in {0, 1};
    pass False for soft labels to get the general (reference) formulation.
    """
    B, C, T = logits.shape
    assert C == 1, "module's boundary term assumes a single channel"
    assert targets.shape == (B, T)
    assert T >= 2, "boundary L1 term needs at least 2 time steps"

    x2 = logits.reshape(B, T)
    y2 = targets.reshape(B, T)

    # Pad T up to a lane multiple by replicating the final column: padded
    # columns then contribute exactly zero to the edge term, and the XLU roll
    # path / (sublane, 128) layout is always used.
    T_pad = _round_up(T, 128)
    if T_pad != T:
        x2 = jnp.pad(x2, ((0, 0), (0, T_pad - T)), mode="edge")
        y2 = jnp.pad(y2, ((0, 0), (0, T_pad - T)), mode="edge")

    x_item = jnp.dtype(x2.dtype).itemsize
    y_item = jnp.dtype(y2.dtype).itemsize
    max_item = max(x_item, y_item)
    # Sublane packing requirement of the narrowest input dtype
    # (8 rows for f32, 16 for bf16, 32 for int8/fp8).
    sub = min(32, max(8, 32 // min(x_item, y_item)))

    # Size tiles purely by a bytes budget; bigger on 128 MiB-VMEM parts
    # (v5e/v6e), smaller on 64 MiB parts (v7x) / unknown.
    vmem_cap = _vmem_capacity_bytes()
    if vmem_cap >= 96 * 1024 * 1024:
        block_budget = 6 * 1024 * 1024
        vmem_limit = 96 * 1024 * 1024
    else:
        block_budget = 3 * 1024 * 1024
        vmem_limit = 48 * 1024 * 1024
    # TODO(synk): add a T-tiling path (128-column blocks + seam handling for
    # the edge term) so extremely long sequences don't force an oversized
    # minimum (sub x T_pad) tile on small-VMEM parts.

    if tile_b is None:
        tile_b = block_budget // max(1, T_pad * max_item)
        tile_b = max(sub, (tile_b // sub) * sub)
        # Keep the "parallel" grid at >= 2 steps whenever the batch allows it,
        # so both v7x TensorCores get work (near-free on v5e/v6e).
        if B >= 2 * sub:
            half = _round_up(-(-B // 2), sub)
            tile_b = min(tile_b, half)
    else:
        tile_b = max(sub, (int(tile_b) // sub) * sub)
    tile_b = min(tile_b, _round_up(B, sub))

    B_pad = _round_up(B, tile_b)
    if B_pad != B:
        # Padded rows: logits=0 (constant sigmoid=0.5) and targets=-1 (ignored)
        # contribute exactly zero to both loss terms.
        x2 = jnp.pad(x2, ((0, B_pad - B), (0, 0)))
        y2 = jnp.pad(y2, ((0, B_pad - B), (0, 0)), constant_values=-1.0)
    num_tiles = B_pad // tile_b

    fast_binary = (
        assume_binary_targets
        and float(gamma_neg).is_integer() and float(gamma_pos).is_integer()
        and 0 <= gamma_neg <= 32 and 0 <= gamma_pos <= 32
    )
    # The boundary L1 mean divisor uses the ORIGINAL batch size / length.
    boundary_scale = float(boundary_weight) / float(B * (T - 1))

    kernel = _make_kernel(gamma_neg, gamma_pos, clip, eps, boundary_scale,
                          fast_binary, T, T_pad)

    n_elem = B_pad * T_pad
    cost = pl.CostEstimate(
        flops=28 * n_elem,
        transcendentals=2 * n_elem,
        bytes_accessed=n_elem * (x_item + y_item) + num_tiles * 4,
    )

    partials = pl.pallas_call(
        kernel,
        grid=(num_tiles,),
        in_specs=[
            pl.BlockSpec((tile_b, T_pad), lambda i: (i, 0)),
            pl.BlockSpec((tile_b, T_pad), lambda i: (i, 0)),
        ],
        out_specs=pl.BlockSpec((1, 1, 1), lambda i: (i, 0, 0)),
        out_shape=jax.ShapeDtypeStruct((num_tiles, 1, 1), jnp.float32),
        compiler_params=pltpu.CompilerParams(
            dimension_semantics=("parallel",),
            vmem_limit_bytes=vmem_limit,
        ),
        cost_estimate=cost,
    )(x2, y2)

    # Per-tile partial sums reduced outside the kernel: keeps the grid axis
    # fully parallel (both TensorCores on v7x) and improves f32 accumulation.
    return jnp.sum(partials)


def _reference(logits, targets, gamma_neg=4, gamma_pos=1, clip=0.05, eps=1e-8,
               boundary_weight=1.0):
    """Pure-JAX reference mirroring the PyTorch forward (general formulation)."""
    x = logits.reshape(-1).astype(jnp.float32)
    y = targets.reshape(-1).astype(jnp.float32)
    mask = y > -0.5
    ys = jnp.where(mask, y, 0.0)
    xs = jnp.where(mask, x, 0.0)
    sig = jax.nn.sigmoid(xs)
    xs_pos = sig
    xs_neg = jnp.minimum(1.0 - sig + clip, 1.0)
    los_pos = ys * jnp.log(jnp.maximum(xs_pos, eps))
    los_neg = (1.0 - ys) * jnp.log(jnp.maximum(xs_neg, eps))
    loss = los_pos + los_neg
    pt = xs_pos * ys + xs_neg * (1.0 - ys)
    g = gamma_pos * ys + gamma_neg * (1.0 - ys)
    loss = loss * jnp.power(1.0 - pt, g)
    main = -jnp.sum(jnp.where(mask, loss, 0.0))

    p = jax.nn.sigmoid(logits.astype(jnp.float32))   # (B, 1, T)
    t = targets.astype(jnp.float32)[:, None, :]      # (B, 1, T)
    pred_edge = jnp.abs(p[:, :, 1:] - p[:, :, :-1])
    target_edge = jnp.minimum(jnp.abs(t[:, :, 1:] - t[:, :, :-1]), 1.0)
    boundary = jnp.mean(jnp.abs(pred_edge - target_edge))
    return main + boundary_weight * boundary


if __name__ == "__main__":
    # T % 128 != 0 exercises the lane-padding + iota-mask path; B=24 exercises
    # both the explicit multi-tile grid and the auto "split across 2 TCs" path.
    B, T = 24, 100
    key = jax.random.PRNGKey(0)
    k1, k2, k3 = jax.random.split(key, 3)

    logits = jax.random.normal(k1, (B, 1, T), dtype=jnp.float32) * 2.0
    # targets in {-1 (ignore), 0, 1}
    u = jax.random.uniform(k2, (B, T))
    lab = (jax.random.uniform(k3, (B, T)) > 0.5).astype(jnp.float32)
    targets = jnp.where(u < 0.2, -1.0, lab).astype(jnp.float32)

    ref = _reference(logits, targets)

    # Explicit small tile -> 3-step grid; auto tiling -> 2 tiles (TC split).
    out_multi = boundary_aware_asymmetric_loss(logits, targets, tile_b=8)
    out_auto = boundary_aware_asymmetric_loss(logits, targets)
    out_multi, out_auto = jax.block_until_ready((out_multi, out_auto))

    assert jnp.allclose(out_multi, ref, rtol=1e-4, atol=1e-3), (out_multi, ref)
    assert jnp.allclose(out_auto, ref, rtol=1e-4, atol=1e-3), (out_auto, ref)

    print("KERNEL_OK")
</pallas_src>

<mosaic_0001>
module attributes {stable_mosaic.version = 11 : i64} {
  func.func @kernel(%arg0: i32, %arg1: memref<8x128xf32, #tpu.memory_space<vmem>>, %arg2: memref<8x128xf32, #tpu.memory_space<vmem>>, %arg3: memref<1x1x1xf32, #tpu.memory_space<vmem>>) attributes {dimension_semantics = [#tpu.dimension_semantics<parallel>], iteration_bounds = array<i64: 3>, scalar_prefetch = 0 : i64, scratch_operands = 0 : i64, tpu.core_type = #tpu.core_type<tc>, window_params = [{transform_indices = @transform_0, window_bounds = array<i64: 8, 128>}, {transform_indices = @transform_1, window_bounds = array<i64: 8, 128>}, {transform_indices = @transform_2, window_bounds = array<i64: 1, 1, 1>}]} {
    %c0 = arith.constant 0 : index
    %c0_0 = arith.constant 0 : index
    %0 = vector.load %arg1[%c0, %c0_0] : memref<8x128xf32, #tpu.memory_space<vmem>>, vector<8x128xf32>
    %c0_1 = arith.constant 0 : index
    %c0_2 = arith.constant 0 : index
    %1 = vector.load %arg2[%c0_1, %c0_2] : memref<8x128xf32, #tpu.memory_space<vmem>>, vector<8x128xf32>
    %2 = tpu.iota {dimensions = array<i32: 1>} : vector<8x128xi32>
    %3 = arith.negf %0 : vector<8x128xf32>
    %4 = math.exp %3 : vector<8x128xf32>
    %cst = arith.constant 1.000000e+00 : f32
    %5 = vector.broadcast %cst : f32 to vector<8x128xf32>
    %6 = arith.addf %5, %4 : vector<8x128xf32>
    %7 = arith.divf %5, %6 : vector<8x128xf32>
    %cst_3 = arith.constant -5.000000e-01 : f32
    %8 = vector.broadcast %cst_3 : f32 to vector<8x128xf32>
    %9 = arith.cmpf ogt, %1, %8 : vector<8x128xf32>
    %c100_i32 = arith.constant 100 : i32
    %10 = vector.broadcast %c100_i32 : i32 to vector<8x128xi32>
    %11 = arith.cmpi slt, %2, %10 : vector<8x128xi32>
    %12 = arith.andi %9, %11 : vector<8x128xi1>
    %cst_4 = arith.constant 1.000000e+00 : f32
    %13 = vector.broadcast %cst_4 : f32 to vector<8x128xf32>
    %14 = arith.subf %13, %7 : vector<8x128xf32>
    %cst_5 = arith.constant 5.000000e-02 : f32
    %15 = vector.broadcast %cst_5 : f32 to vector<8x128xf32>
    %16 = arith.addf %14, %15 : vector<8x128xf32>
    %cst_6 = arith.constant 1.000000e+00 : f32
    %17 = vector.broadcast %cst_6 : f32 to vector<8x128xf32>
    %18 = arith.minimumf %16, %17 : vector<8x128xf32>
    %cst_7 = arith.constant 5.000000e-01 : f32
    %19 = vector.broadcast %cst_7 : f32 to vector<8x128xf32>
    %20 = arith.cmpf ogt, %1, %19 : vector<8x128xf32>
    %21 = arith.select %20, %7, %18 : vector<8x128xi1>, vector<8x128xf32>
    %cst_8 = arith.constant 9.99999993E-9 : f32
    %22 = vector.broadcast %cst_8 : f32 to vector<8x128xf32>
    %23 = arith.maximumf %21, %22 : vector<8x128xf32>
    %24 = math.log %23 : vector<8x128xf32>
    %cst_9 = arith.constant 1.000000e+00 : f32
    %25 = vector.broadcast %cst_9 : f32 to vector<8x128xf32>
    %26 = arith.subf %25, %21 : vector<8x128xf32>
    %27 = arith.mulf %26, %26 : vector<8x128xf32>
    %28 = arith.mulf %27, %27 : vector<8x128xf32>
    %29 = arith.select %20, %26, %28 : vector<8x128xi1>, vector<8x128xf32>
    %30 = arith.mulf %24, %29 : vector<8x128xf32>
    %cst_10 = arith.constant 0.000000e+00 : f32
    %31 = vector.broadcast %cst_10 : f32 to vector<8x128xf32>
    %32 = arith.subf %31, %30 : vector<8x128xf32>
    %cst_11 = arith.constant 0.000000e+00 : f32
    %33 = vector.broadcast %cst_11 : f32 to vector<8x128xf32>
    %34 = arith.select %12, %32, %33 : vector<8x128xi1>, vector<8x128xf32>
    %c127_i32 = arith.constant 127 : i32
    %35 = tpu.dynamic_rotate %7 by %c127_i32 dim 1 : vector<8x128xf32>, i32 -> vector<8x128xf32>
    %c127_i32_12 = arith.constant 127 : i32
    %36 = tpu.dynamic_rotate %1 by %c127_i32_12 dim 1 : vector<8x128xf32>, i32 -> vector<8x128xf32>
    %37 = arith.subf %35, %7 : vector<8x128xf32>
    %38 = math.absf %37 : vector<8x128xf32>
    %39 = arith.subf %36, %1 : vector<8x128xf32>
    %40 = math.absf %39 : vector<8x128xf32>
    %cst_13 = arith.constant 1.000000e+00 : f32
    %41 = vector.broadcast %cst_13 : f32 to vector<8x128xf32>
    %42 = arith.minimumf %40, %41 : vector<8x128xf32>
    %43 = arith.subf %38, %42 : vector<8x128xf32>
    %44 = math.absf %43 : vector<8x128xf32>
    %c99_i32 = arith.constant 99 : i32
    %45 = vector.broadcast %c99_i32 : i32 to vector<8x128xi32>
    %46 = arith.cmpi slt, %2, %45 : vector<8x128xi32>
    %cst_14 = arith.constant 0.000000e+00 : f32
    %47 = vector.broadcast %cst_14 : f32 to vector<8x128xf32>
    %48 = arith.select %46, %44, %47 : vector<8x128xi1>, vector<8x128xf32>
    %cst_15 = arith.constant 4.20875411E-4 : f32
    %49 = vector.broadcast %cst_15 : f32 to vector<8x128xf32>
    %50 = arith.mulf %49, %48 : vector<8x128xf32>
    %51 = arith.addf %34, %50 : vector<8x128xf32>
    %52 = vector.shape_cast %51 : vector<8x128xf32> to vector<1x8x128xf32>
    %cst_16 = arith.constant dense<0.000000e+00> : vector<1xf32>
    %53 = vector.multi_reduction <add>, %52, %cst_16 [1, 2] : vector<1x8x128xf32> to vector<1xf32>
    %54 = vector.shape_cast %53 : vector<1xf32> to vector<1x1x1xf32>
    %55 = vector.extract %54[0, 0, 0] : f32 from vector<1x1x1xf32>
    %56 = vector.broadcast %55 : f32 to vector<1x1x1xf32>
    %c0_17 = arith.constant 0 : index
    %c0_18 = arith.constant 0 : index
    %c0_19 = arith.constant 0 : index
    %57 = vector.load %arg3[%c0_17, %c0_18, %c0_19] : memref<1x1x1xf32, #tpu.memory_space<vmem>>, vector<1x1x1xf32>
    tpu.vector_store %arg3[%c0_17, %c0_18, %c0_19], %56 {strides = array<i32>} : memref<1x1x1xf32, #tpu.memory_space<vmem>>, vector<1x1x1xf32>,
    return
  }
  func.func @transform_0(%arg0: i32) -> (i32, i32) {
    %c0_i32 = arith.constant 0 : i32
    %c0_i32_0 = arith.constant 0 : i32
    return %arg0, %c0_i32 : i32, i32
  }
  func.func @transform_1(%arg0: i32) -> (i32, i32) {
    %c0_i32 = arith.constant 0 : i32
    %c0_i32_0 = arith.constant 0 : i32
    return %arg0, %c0_i32 : i32, i32
  }
  func.func @transform_2(%arg0: i32) -> (i32, i32, i32) {
    %c0_i32 = arith.constant 0 : i32
    %c0_i32_0 = arith.constant 0 : i32
    %c0_i32_1 = arith.constant 0 : i32
    return %arg0, %c0_i32, %c0_i32_0 : i32, i32, i32
  }
}

</mosaic_0001>

<llo_original>
// kernel: tpu_custom_call.1
$region0: #{tpu_custom_call.1}
  #allocation0 [shape = 'u32[]', space=smem, size = 0x4, offset = 0x4, fixed_abs, tag = 'smem constant byte address 0x4 - core index']
  #allocation1 [shape = 'u32[144,128]{1,0:T(1,128)}', space=vmem, size = 0x12000, scoped, tag = 'internal scratch']
  %s0 = inlined_call_operand.hbm [shape: f32[24,128], index: 0, kind: input, shape index: {}]
  %s1 = inlined_call_operand.hbm [shape: f32[24,128], index: 1, kind: input, shape index: {}]
  %s2 = inlined_call_operand.vmem [shape: f32[3,1,1], index: 2, kind: output, shape index: {}]
  %s3 = sld [smem:[#allocation0]]
  $region49: #{tpu_custom_call.1} parent=0
    _
  %s5 = ssub.s32 1, %s3
  %s6 = scalar_select 0, %s5, %s3
  $region1: #{tpu_custom_call.1} parent=0
    #allocation2 [shape = 'u8[8192]{0}', space=vmem, size = 0x2000, scoped, tag = 'input window, operand 0']
    #allocation3 [shape = 's32[2]{0}', space=sflag, size = 0x8, scoped, tag = 'scoped memory for tpu_custom_call.1']
    #allocation4 [shape = 'u8[8192]{0}', space=vmem, size = 0x2000, scoped, tag = 'input window, operand 1']
    #allocation5 [shape = 's32[2]{0}', space=sflag, size = 0x8, scoped, tag = 'scoped memory for tpu_custom_call.1']
    %7 = vsyncpa [#allocation3], 0
    %s8 = scalar_lea.sflag [#allocation3], 1
    %9 = vsyncpa %s8, 0
    %10 = vsyncpa [#allocation5], 0
    %s11 = scalar_lea.sflag [#allocation5], 1
    %12 = vsyncpa %s11, 0
    loop: start=0, step=1, limit=5
    $region2: #{tpu_custom_call.1} parent=1 // loop_pre_header
      _
    $region3: #{tpu_custom_call.1} parent=1 // loop_header
      %s14 = sphi 0, %s18
      %p15 = scmp.ge.s32.totalorder %s14, 5
      %s24 = sphi 0, %s26
      %s27 = sphi 0, %s24
      %s28 = sphi 0, %s27
      %s44 = sphi 0, %s28
      %s50 = sphi 0, %s52
      %s53 = sphi 0, %s50
      %s54 = sphi 0, %s53
      %s70 = sphi 0, %s54
      %s76 = sphi 0, %s78
      %s79 = sphi 0, %s76
      %s80 = sphi 0, %s79
      %s96 = sphi 0, %s80
    $region4: #{tpu_custom_call.1} parent=1 // loop_header_branch
      %17 = sbr.rel (%p15) target = $region8
    $region5: #{tpu_custom_call.1} parent=1 // loop_body
      %s19 = ssub.s32 %s14, 1
      %s20 = ssub.s32 %s14, 2
      %s21 = sadd.s32 %s14, 1
      %s22 = ssub.s32 %s14, %s21
      %p23 = scmp.eq.s32.totalorder %s22, 0
      %s25 = sadd.s32 %s24, 1
      %s26 = scalar_select %p23, %s24, %s25
      %p29 = pneg %p23
      %p30 = scmp.eq.s32.totalorder %s14, 2
      %p31 = por %p29, %p30
      %p32 = scmp.ne.s32.totalorder %s24, %s27
      %p33 = scmp.eq.s32.totalorder %s14, 0
      %p34 = por %p32, %p33
      %p35 = scmp.ne.s32.totalorder %s24, %s27
      %p36 = scmp.eq.s32.totalorder %s19, 2
      %p37 = por %p35, %p36
      %p38 = scmp.ne.s32.totalorder %s27, %s28
      %p39 = scmp.eq.s32.totalorder %s19, 0
      %p40 = por %p38, %p39
      %p41 = scmp.ne.s32.totalorder %s27, %s28
      %p42 = scmp.eq.s32.totalorder %s20, 2
      %p43 = por %p41, %p42
      %p45 = scmp.ne.s32.totalorder %s28, %s44
      %p46 = scmp.eq.s32.totalorder %s20, 0
      %p47 = por %p45, %p46
      %s48 = ssub.s32 %s14, %s21
      %p49 = scmp.eq.s32.totalorder %s48, 0
      %s51 = sadd.s32 %s50, 1
      %s52 = scalar_select %p49, %s50, %s51
      %p55 = pneg %p49
      %p56 = scmp.eq.s32.totalorder %s14, 2
      %p57 = por %p55, %p56
      %p58 = scmp.ne.s32.totalorder %s50, %s53
      %p59 = scmp.eq.s32.totalorder %s14, 0
      %p60 = por %p58, %p59
      %p61 = scmp.ne.s32.totalorder %s50, %s53
      %p62 = scmp.eq.s32.totalorder %s19, 2
      %p63 = por %p61, %p62
      %p64 = scmp.ne.s32.totalorder %s53, %s54
      %p65 = scmp.eq.s32.totalorder %s19, 0
      %p66 = por %p64, %p65
      %p67 = scmp.ne.s32.totalorder %s53, %s54
      %p68 = scmp.eq.s32.totalorder %s20, 2
      %p69 = por %p67, %p68
      %p71 = scmp.ne.s32.totalorder %s54, %s70
      %p72 = scmp.eq.s32.totalorder %s20, 0
      %p73 = por %p71, %p72
      %s74 = ssub.s32 %s14, %s21
      %p75 = scmp.eq.s32.totalorder %s74, 0
      %s77 = sadd.s32 %s76, 1
      %s78 = scalar_select %p75, %s76, %s77
      %p81 = pneg %p75
      %p82 = scmp.eq.s32.totalorder %s14, 2
      %p83 = por %p81, %p82
      %p84 = scmp.ne.s32.totalorder %s76, %s79
      %p85 = scmp.eq.s32.totalorder %s14, 0
      %p86 = por %p84, %p85
      %p87 = scmp.ne.s32.totalorder %s76, %s79
      %p88 = scmp.eq.s32.totalorder %s19, 2
      %p89 = por %p87, %p88
      %p90 = scmp.ne.s32.totalorder %s79, %s80
      %p91 = scmp.eq.s32.totalorder %s19, 0
      %p92 = por %p90, %p91
      %p93 = scmp.ne.s32.totalorder %s79, %s80
      %p94 = scmp.eq.s32.totalorder %s20, 2
      %p95 = por %p93, %p94
      %p97 = scmp.ne.s32.totalorder %s80, %s96
      %p98 = scmp.eq.s32.totalorder %s20, 0
      %p99 = por %p97, %p98
      %p100 = scmp.le.s32.totalorder 1, %s14
      %p101 = scmp.lt.s32.totalorder %s14, 4
      %p102 = pnand %p100, %p101
      %p103 = pneg %p102
      // Predicated region
      $region9: #{tpu_custom_call.1} parent=5 // pred_check
        _
      $region10: #{tpu_custom_call.1} parent=5 // pred_check_branch
        %105 = sbr.rel (%p102) target = $region12
      $region11: #{tpu_custom_call.1} parent=5 // pred_region
        %s106 = ssub.s32 %s14, 1
      $region12: #{tpu_custom_call.1} parent=5 // pred_fallthru
        _
      %p107 = scmp.lt.s32.totalorder %s14, 3
      // Predicated region
      $region13: #{tpu_custom_call.1} parent=5 // pred_check
        %p108 = pneg %p107
      $region14: #{tpu_custom_call.1} parent=5 // pred_check_branch
        %110 = sbr.rel (%p108) target = $region16
      $region15: #{tpu_custom_call.1} parent=5 // pred_region
        // Predicated region
        $region17: #{tpu_custom_call.1} parent=15 // pred_check
          %p111 = pneg %p34
        $region18: #{tpu_custom_call.1} parent=15 // pred_check_branch
          %113 = sbr.rel (%p111) target = $region20
        $region19: #{tpu_custom_call.1} parent=15 // pred_region
          %s114 = sand.u32 %s24, 1
          %s115 = scalar_lea.sflag [#allocation3], %s114
          %s116 = sand.u32 %s24, 1
          %s117 = smul.addr %s116, 8
          %s118 = scalar_lea.vmem [#allocation2], %s117
          %s120 = ssub.s32 128, 128
          %121 = vsyncadd %s115, %s120
          %s122 = smul.addr %s14, 128
          %s123 = scalar_lea.hbm %s0, %s122
          %s125 = sshll.u32 %s118, 4
          %s126 = int_to_ptr.vmem [resolvable:$true] %s125
          %128 = dma.hbm_to_vmem [thread:$0]  %s123, 128, %s126, %s115
        $region20: #{tpu_custom_call.1} parent=15 // pred_fallthru
          _
        // Predicated region
        $region21: #{tpu_custom_call.1} parent=15 // pred_check
          %p129 = pneg %p60
        $region22: #{tpu_custom_call.1} parent=15 // pred_check_branch
          %131 = sbr.rel (%p129) target = $region24
        $region23: #{tpu_custom_call.1} parent=15 // pred_region
          %s132 = sand.u32 %s50, 1
          %s133 = scalar_lea.sflag [#allocation5], %s132
          %s134 = sand.u32 %s50, 1
          %s135 = smul.addr %s134, 8
          %s136 = scalar_lea.vmem [#allocation4], %s135
          %s138 = ssub.s32 128, 128
          %139 = vsyncadd %s133, %s138
          %s140 = smul.addr %s14, 128
          %s141 = scalar_lea.hbm %s1, %s140
          %s143 = sshll.u32 %s136, 4
          %s144 = int_to_ptr.vmem [resolvable:$true] %s143
          %146 = dma.hbm_to_vmem [thread:$0]  %s141, 128, %s144, %s133
        $region24: #{tpu_custom_call.1} parent=15 // pred_fallthru
          _
      $region16: #{tpu_custom_call.1} parent=5 // pred_fallthru
        _
      %p147 = scmp.le.s32.totalorder 1, %s14
      %p148 = scmp.lt.s32.totalorder %s14, 4
      %p149 = pnand %p147, %p148
      %p150 = pneg %p149
      // Predicated region
      $region25: #{tpu_custom_call.1} parent=5 // pred_check
        _
      $region26: #{tpu_custom_call.1} parent=5 // pred_check_branch
        %152 = sbr.rel (%p149) target = $region28
      $region27: #{tpu_custom_call.1} parent=5 // pred_region
        %s153 = ssub.s32 %s14, 1
        %s154 = sand.u32 %s27, 1
        %s155 = scalar_lea.sflag [#allocation3], %s154
        %s156 = sand.u32 %s27, 1
        %s157 = smul.addr %s156, 8
        %s158 = scalar_lea.vmem [#allocation2], %s157
        // Predicated region
        $region29: #{tpu_custom_call.1} parent=27 // pred_check
          %p159 = pneg %p40
        $region30: #{tpu_custom_call.1} parent=27 // pred_check_branch
          %161 = sbr.rel (%p159) target = $region32
        $region31: #{tpu_custom_call.1} parent=27 // pred_region
          %162 = dma.done %s155, 128
        $region32: #{tpu_custom_call.1} parent=27 // pred_fallthru
          _
        %s163 = sand.u32 %s53, 1
        %s164 = scalar_lea.sflag [#allocation5], %s163
        %s165 = sand.u32 %s53, 1
        %s166 = smul.addr %s165, 8
        %s167 = scalar_lea.vmem [#allocation4], %s166
        // Predicated region
        $region33: #{tpu_custom_call.1} parent=27 // pred_check
          %p168 = pneg %p66
        $region34: #{tpu_custom_call.1} parent=27 // pred_check_branch
          %170 = sbr.rel (%p168) target = $region36
        $region35: #{tpu_custom_call.1} parent=27 // pred_region
          %171 = dma.done %s164, 128
        $region36: #{tpu_custom_call.1} parent=27 // pred_fallthru
          _
        %s172 = sand.u32 %s27, 1
        %s173 = scalar_lea.sflag [#allocation3], %s172
        %s174 = sand.u32 %s27, 1
        %s175 = smul.addr %s174, 8
        %s176 = scalar_lea.vmem [#allocation2], %s175
        %p177 = pneg %p40
        %p178 = pneg %p37
        %s179 = sand.u32 %s53, 1
        %s180 = scalar_lea.sflag [#allocation5], %s179
        %s181 = sand.u32 %s53, 1
        %s182 = smul.addr %s181, 8
        %s183 = scalar_lea.vmem [#allocation4], %s182
        %p184 = pneg %p66
        %p185 = pneg %p63
        %p186 = pneg %p92
        %p187 = pneg %p89
        %p188 = scmp.lt.s32.totalorder %s19, 2
        %s189 = scalar_select %p188, %s19, 2
        %s190 = scalar_lea.vmem %s2, %s189
        %p191 = scmp.lt.s32.totalorder %s19, 2
        %s192 = scalar_select %p191, %s19, 2
        %s193 = scalar_lea.vmem %s2, %s192
        %v194 = vld [vmem:[%s158] sm:$0xff]
        %v195 = vld [vmem:[%s167] sm:$0xff]
        %v196 = vlaneseq
        %v197 = vand.u32 %v196, 127
        %v198 = vxor.u32 %v194, 2147483648
        %v199 = vmul.f32 %v198, 1.442695
        %v200 = vpow.pop %v199
        %v201 = vadd.f32 %v200, 1.0
        %v202 = vrcp.pop %v201
        %v203 = vmul.f32 1.0, %v202
        %vm204 = vcmp.gt.f32.partialorder %v195, -0.5
        %vm205 = vcmp.lt.s32.totalorder %v197, 100
        %vm206 = vmand %vm204, %vm205
        %v207 = vsub.f32 1.0, %v203
        %v208 = vadd.f32 %v207, 0.05
        %v209 = vmin.f32 %v208, 1.0
        %vm210 = vcmp.gt.f32.partialorder %v195, 0.5
        %v211 = vsel %vm210, %v203, %v209
        %v212 = vmax.f32 %v211, 1e-08
        %v213 = vlog2.pop %v212
        %v214 = vmul.f32 %v213, 0.6931472
        %v215 = vsub.f32 1.0, %v211
        %v216 = vmul.f32 %v215, %v215
        %v217 = vmul.f32 %v216, %v216
        %v218 = vsel %vm210, %v215, %v217
        %v219 = vmul.f32 %v214, %v218
        %v220 = vsub.f32 0.0, %v219
        %v221 = vsel %vm206, %v220, 0.0
        %222 = vrot.lane.b32.xlu0 %v203, 127
        %v223 = vpop.permute.xlu0 %222
        %224 = vrot.lane.b32.xlu0 %v195, 127
        %v225 = vpop.permute.xlu0 %224
        %v226 = vsub.f32 %v223, %v203
        %v227 = vand.u32 2147483647, %v226
        %v228 = vsub.f32 %v225, %v195
        %v229 = vand.u32 2147483647, %v228
        %v230 = vmin.f32 %v229, 1.0
        %v231 = vsub.f32 %v227, %v230
        %v232 = vand.u32 2147483647, %v231
        %vm233 = vcmp.lt.s32.totalorder %v197, 99
        %v234 = vsel %vm233, %v232, 0.0
        %v235 = vmul.f32 %v234, 0.0004208754
        %v236 = vadd.f32 %v221, %v235
        %237 = vadd.xlane.f32.xlu0 %v236
        %v238 = vpop.xlane.xlu0 %237
        %v239 = vrot.slane %v238, 4
        %v240 = vadd.f32 %v238, %v239
        %v241 = vrot.slane %v240, 2
        %v242 = vadd.f32 %v240, %v241
        %v243 = vrot.slane %v242, 1
        %v244 = vadd.f32 %v242, %v243
        %s245 = vtos %v244
        %v246 = vstv %s245
        %vm247 = vcmask 0
        %248 = vst.msk [vmem:[%s193] sm:$0x1] %vm247, %v246
        %p249 = scmp.lt.s32.totalorder %s19, 2
        %s250 = scalar_select %p249, %s19, 2
        %s251 = scalar_lea.vmem %s2, %s250
        // Predicated region
        $region37: #{tpu_custom_call.1} parent=27 // pred_check
          %p252 = pneg %p89
        $region38: #{tpu_custom_call.1} parent=27 // pred_check_branch
          %254 = sbr.rel (%p252) target = $region40
        $region39: #{tpu_custom_call.1} parent=27 // pred_region
          _
        $region40: #{tpu_custom_call.1} parent=27 // pred_fallthru
          _
      $region28: #{tpu_custom_call.1} parent=5 // pred_fallthru
        _
      %p255 = scmp.le.s32.totalorder 2, %s14
      // Predicated region
      $region41: #{tpu_custom_call.1} parent=5 // pred_check
        %p256 = pneg %p255
      $region42: #{tpu_custom_call.1} parent=5 // pred_check_branch
        %258 = sbr.rel (%p256) target = $region44
      $region43: #{tpu_custom_call.1} parent=5 // pred_region
        %s259 = ssub.s32 %s14, 2
        // Predicated region
        $region45: #{tpu_custom_call.1} parent=43 // pred_check
          %p260 = pneg %p95
        $region46: #{tpu_custom_call.1} parent=43 // pred_check_branch
          %262 = sbr.rel (%p260) target = $region48
        $region47: #{tpu_custom_call.1} parent=43 // pred_region
          %p263 = scmp.lt.s32.totalorder %s20, 2
          %s264 = scalar_select %p263, %s20, 2
          %s265 = scalar_lea.vmem %s2, %s264
        $region48: #{tpu_custom_call.1} parent=43 // pred_fallthru
          _
      $region44: #{tpu_custom_call.1} parent=5 // pred_fallthru
        _
    $region6: #{tpu_custom_call.1} parent=1 // loop_footer
      %s18 = sadd.s32 1, %s14
    $region7: #{tpu_custom_call.1} parent=1 // loop_footer_branch
      %13 = sbr.rel target = $region3
    $region8: #{tpu_custom_call.1} parent=1 // loop_exit
      _
    %266 = vsyncpa [#allocation3], 1
    %s267 = scalar_lea.sflag [#allocation3], 1
    %268 = vsyncpa %s267, 1
    %269 = vsyncpa [#allocation5], 1
    %s270 = scalar_lea.sflag [#allocation5], 1
    %271 = vsyncpa %s270, 1

</llo_original>
